<compile_context>
chip_gen: v6e
topology: v6e:2x2x1
jax: 0.10.0
libtpu: 0.0.40
codegen_flags: <defaults>
</compile_context>

<pallas_src>
import functools

import jax
import jax.numpy as jnp
from jax.experimental import pallas as pl
from jax.experimental.pallas import tpu as pltpu


def _round_up(x, m):
    return ((x + m - 1) // m) * m


def _spatial_softmax_kernel(feat_ref, pos_ref, out_ref, *, inv_temperature,
                            apply_temperature):
    # feat_ref: (bm, HW)  block of flattened feature rows (native dtype)
    # pos_ref:  (HW, 2)   col 0 = pos_x, col 1 = pos_y (same for every block)
    # out_ref:  (bm, 2)   [expected_x, expected_y] per row
    f = feat_ref[...].astype(jnp.float32)
    if apply_temperature:           # static Python branch; no-op when temp==1
        f = f * inv_temperature

    # numerically-stable softmax numerator over the spatial (last) axis
    m = jnp.max(f, axis=-1, keepdims=True)
    e = jnp.exp(f - m)
    denom = jnp.sum(e, axis=-1, keepdims=True)           # (bm, 1)

    # Both weighted sums in one MXU matmul: (bm, HW) @ (HW, 2) -> (bm, 2).
    sums = jnp.dot(e, pos_ref[...], preferred_element_type=jnp.float32)

    # Normalize with a per-row reciprocal instead of a full-tile divide.
    inv_denom = pl.reciprocal(denom, approx=False)        # exact: keeps 1e-5 tol
    out_ref[...] = (sums * inv_denom).astype(out_ref.dtype)


def make_pos_buffers(height, width):
    """Replicates the (quirky) np.meshgrid construction from the PyTorch module."""
    # np.meshgrid default 'xy' indexing: grids have shape (width, height)
    pos_x_grid, pos_y_grid = jnp.meshgrid(
        jnp.linspace(-1.0, 1.0, height), jnp.linspace(-1.0, 1.0, width)
    )
    pos_x = pos_x_grid.reshape(height * width).astype(jnp.float32)
    pos_y = pos_y_grid.reshape(height * width).astype(jnp.float32)
    return pos_x, pos_y


def spatial_softmax(feature, *, height, width, channel, temperature=None):
    """feature: (N, C, H, W) -> (N, 2*C) float32 keypoints."""
    n, c, h, w = feature.shape
    assert (c, h, w) == (channel, height, width)
    hw = height * width
    rows = n * c

    temp = 1.0 if temperature is None else float(temperature)
    inv_temperature = 1.0 / temp
    apply_temperature = temp != 1.0

    pos_x, pos_y = make_pos_buffers(height, width)
    pos = jnp.stack([pos_x, pos_y], axis=1)               # (HW, 2)

    # Keep the feature in its native dtype (halves HBM traffic for bf16
    # inputs); the kernel upcasts to f32 internally.
    feat_flat = feature.reshape(rows, hw)

    # --- row-tile sizing -------------------------------------------------
    # Budget ~8 MiB for the double-buffered feature input so the pipeline
    # fits comfortably under the scoped-VMEM defaults on v5e (16 MiB),
    # v6e (32 MiB) and v7x (32 MiB of 64 MiB physical).
    itemsize = jnp.dtype(feat_flat.dtype).itemsize
    vmem_budget_bytes = 8 * 1024 * 1024
    bm_cap = max(8, (vmem_budget_bytes // (2 * hw * itemsize)) // 8 * 8)
    bm = min(1024, bm_cap, _round_up(rows, 8))
    bm = max(8, (bm // 8) * 8)

    rows_padded = _round_up(rows, bm)
    if rows_padded != rows:
        # Zero-padded rows produce a uniform softmax; their outputs are
        # discarded by the slice below.
        feat_flat = jnp.pad(feat_flat, ((0, rows_padded - rows), (0, 0)))
    grid = (rows_padded // bm,)

    kernel = functools.partial(
        _spatial_softmax_kernel,
        inv_temperature=inv_temperature,
        apply_temperature=apply_temperature,
    )

    out = pl.pallas_call(
        kernel,
        out_shape=jax.ShapeDtypeStruct((rows_padded, 2), jnp.float32),
        grid_spec=pltpu.PrefetchScalarGridSpec(
            num_scalar_prefetch=0,
            grid=grid,
            in_specs=[
                pl.BlockSpec((bm, hw), lambda i: (i, 0)),
                # constant index_map -> pos stays resident in VMEM
                pl.BlockSpec((hw, 2), lambda i: (0, 0)),
            ],
            out_specs=pl.BlockSpec((bm, 2), lambda i: (i, 0)),
        ),
        compiler_params=pltpu.CompilerParams(
            dimension_semantics=("parallel",),
        ),
    )(feat_flat, pos)

    # (N*C, 2) -> (N, 2*C) : per-channel interleaved [x_c, y_c, ...]
    return out[:rows].reshape(n, c * 2)


def spatial_softmax_ref(feature, *, height, width, channel, temperature=None):
    """Pure-JAX reference matching the PyTorch forward exactly."""
    temp = 1.0 if temperature is None else float(temperature)
    n = feature.shape[0]
    pos_x, pos_y = make_pos_buffers(height, width)
    f = feature.reshape(-1, height * width).astype(jnp.float32) / temp
    sm = jax.nn.softmax(f, axis=-1)
    ex = jnp.sum(pos_x[None, :] * sm, axis=1, keepdims=True)
    ey = jnp.sum(pos_y[None, :] * sm, axis=1, keepdims=True)
    return jnp.concatenate([ex, ey], axis=1).reshape(n, channel * 2)


if __name__ == "__main__":
    N, C, H, W = 2, 4, 16, 16
    key = jax.random.PRNGKey(0)
    x = jax.random.normal(key, (N, C, H, W), dtype=jnp.float32)

    out = spatial_softmax(x, height=H, width=W, channel=C, temperature=None)
    out = jax.block_until_ready(out)

    ref = spatial_softmax_ref(x, height=H, width=W, channel=C, temperature=None)
    assert out.shape == (N, 2 * C), out.shape
    assert jnp.allclose(out, ref, atol=1e-5, rtol=1e-5), (out, ref)

    # also exercise the explicit-temperature path
    out_t = spatial_softmax(x, height=H, width=W, channel=C, temperature=2.0)
    out_t = jax.block_until_ready(out_t)
    ref_t = spatial_softmax_ref(x, height=H, width=W, channel=C, temperature=2.0)
    assert jnp.allclose(out_t, ref_t, atol=1e-5, rtol=1e-5), (out_t, ref_t)

    print("KERNEL_OK")
</pallas_src>

<mosaic_0001>
module attributes {stable_mosaic.version = 11 : i64} {
  func.func @_spatial_softmax_kernel(%arg0: i32, %arg1: memref<8x256xf32, #tpu.memory_space<vmem>>, %arg2: memref<256x2xf32, #tpu.memory_space<vmem>>, %arg3: memref<8x2xf32, #tpu.memory_space<vmem>>) attributes {dimension_semantics = [#tpu.dimension_semantics<parallel>], iteration_bounds = array<i64: 1>, scalar_prefetch = 0 : i64, scratch_operands = 0 : i64, tpu.core_type = #tpu.core_type<tc>, window_params = [{transform_indices = @transform_0, window_bounds = array<i64: 8, 256>}, {pipeline_mode = #tpu.pipeline_mode<synchronous>, transform_indices = @transform_1, window_bounds = array<i64: 256, 2>}, {transform_indices = @transform_2, window_bounds = array<i64: 8, 2>}]} {
    %c0 = arith.constant 0 : index
    %c0_0 = arith.constant 0 : index
    %0 = vector.load %arg1[%c0, %c0_0] : memref<8x256xf32, #tpu.memory_space<vmem>>, vector<8x256xf32>
    %cst = arith.constant dense<0xFF800000> : vector<8xf32>
    %1 = vector.multi_reduction <maximumf>, %0, %cst [1] : vector<8x256xf32> to vector<8xf32>
    %2 = vector.shape_cast %1 : vector<8xf32> to vector<8x1xf32>
    %3 = vector.broadcast %2 : vector<8x1xf32> to vector<8x256xf32>
    %4 = arith.subf %0, %3 : vector<8x256xf32>
    %5 = math.exp %4 : vector<8x256xf32>
    %cst_1 = arith.constant dense<0.000000e+00> : vector<8xf32>
    %6 = vector.multi_reduction <add>, %5, %cst_1 [1] : vector<8x256xf32> to vector<8xf32>
    %7 = vector.shape_cast %6 : vector<8xf32> to vector<8x1xf32>
    %c0_2 = arith.constant 0 : index
    %c0_3 = arith.constant 0 : index
    %8 = vector.load %arg2[%c0_2, %c0_3] : memref<256x2xf32, #tpu.memory_space<vmem>>, vector<256x2xf32>
    %cst_4 = arith.constant dense<0.000000e+00> : vector<8x2xf32>
    %9 = tpu.matmul %5, %8, %cst_4 {dimension_numbers = #tpu.dot_dimension_numbers<[1], [0], [0], [1], [0, 0, 1, 1], [], []>} : vector<8x256xf32>, vector<256x2xf32>, vector<8x2xf32> -> vector<8x2xf32>
    %10 = tpu.reciprocal %7 : vector<8x1xf32> -> vector<8x1xf32>
    %11 = vector.broadcast %10 : vector<8x1xf32> to vector<8x2xf32>
    %12 = arith.mulf %9, %11 : vector<8x2xf32>
    %c0_5 = arith.constant 0 : index
    %c0_6 = arith.constant 0 : index
    %13 = vector.load %arg3[%c0_5, %c0_6] : memref<8x2xf32, #tpu.memory_space<vmem>>, vector<8x2xf32>
    tpu.vector_store %arg3[%c0_5, %c0_6], %12 {strides = array<i32>} : memref<8x2xf32, #tpu.memory_space<vmem>>, vector<8x2xf32>,
    return
  }
  func.func @transform_0(%arg0: i32) -> (i32, i32) {
    %c0_i32 = arith.constant 0 : i32
    %c0_i32_0 = arith.constant 0 : i32
    return %arg0, %c0_i32 : i32, i32
  }
  func.func @transform_1(%arg0: i32) -> (i32, i32) {
    %c0_i32 = arith.constant 0 : i32
    %c0_i32_0 = arith.constant 0 : i32
    %c0_i32_1 = arith.constant 0 : i32
    return %c0_i32, %c0_i32_0 : i32, i32
  }
  func.func @transform_2(%arg0: i32) -> (i32, i32) {
    %c0_i32 = arith.constant 0 : i32
    %c0_i32_0 = arith.constant 0 : i32
    return %arg0, %c0_i32 : i32, i32
  }
}

</mosaic_0001>

<llo_original>
// kernel: tpu_custom_call.1
$region0: #{tpu_custom_call.1}
  #allocation0 [shape = 'u32[]', space=smem, size = 0x4, offset = 0x4, fixed_abs, tag = 'smem constant byte address 0x4 - core index']
  #allocation1 [shape = 'u32[144,128]{1,0:T(1,128)}', space=vmem, size = 0x12000, scoped, tag = 'internal scratch']
  %s0 = inlined_call_operand.vmem [shape: f32[8,256], index: 0, kind: input, shape index: {}]
  %s1 = inlined_call_operand.vmem [shape: f32[256,2], index: 1, kind: input, shape index: {}]
  %s2 = inlined_call_operand.vmem [shape: f32[8,2], index: 2, kind: output, shape index: {}]
  %s3 = sld [smem:[#allocation0]]
  $region18: #{tpu_custom_call.1} parent=0
    _
  %s5 = ssub.s32 1, %s3
  %s6 = scalar_select 0, %s5, %s3
  // Predicated region
  $region2: #{tpu_custom_call.1} parent=0 // pred_check
    _
  $region3: #{tpu_custom_call.1} parent=0 // pred_check_branch
    %8 = sbr.rel (0) target = $region5
  $region4: #{tpu_custom_call.1} parent=0 // pred_region
    _
  $region5: #{tpu_custom_call.1} parent=0 // pred_fallthru
    _
  // Predicated region
  $region6: #{tpu_custom_call.1} parent=0 // pred_check
    _
  $region7: #{tpu_custom_call.1} parent=0 // pred_check_branch
    %10 = sbr.rel (0) target = $region9
  $region8: #{tpu_custom_call.1} parent=0 // pred_region
    _
  $region9: #{tpu_custom_call.1} parent=0 // pred_fallthru
    _
  %v11 = vld [vmem:[%s0] sm:$0xff]
  %v12 = vld [vmem:[%s0 + $0x8] sm:$0xff]
  %v13 = vmax.f32 %v11, %v12
  %14 = vmax.xlane.f32.xlu0 %v13
  %v15 = vpop.xlane.xlu0 %14
  %v16 = vsub.f32 %v11, %v15
  %v17 = vsub.f32 %v12, %v15
  %v18 = vmul.f32 %v16, 1.442695
  %v19 = vpow.pop %v18
  %v20 = vmul.f32 %v17, 1.442695
  %v21 = vpow.pop %v20
  %v22 = vadd.f32 %v19, %v21
  %23 = vadd.xlane.f32.xlu0 %v22
  %v24 = vpop.xlane.xlu0 %23
  %v25 = vld [vmem:[%s1] sm:$0xff]
  %v26 = vld [vmem:[%s1 + $0x8] sm:$0xff]
  %v27 = vld [vmem:[%s1 + $0x10] sm:$0xff]
  %v28 = vld [vmem:[%s1 + $0x18] sm:$0xff]
  %v29 = vld [vmem:[%s1 + $0x20] sm:$0xff]
  %v30 = vld [vmem:[%s1 + $0x28] sm:$0xff]
  %v31 = vld [vmem:[%s1 + $0x30] sm:$0xff]
  %v32 = vld [vmem:[%s1 + $0x38] sm:$0xff]
  %v33 = vld [vmem:[%s1 + $0x40] sm:$0xff]
  %v34 = vld [vmem:[%s1 + $0x48] sm:$0xff]
  %v35 = vld [vmem:[%s1 + $0x50] sm:$0xff]
  %v36 = vld [vmem:[%s1 + $0x58] sm:$0xff]
  %v37 = vld [vmem:[%s1 + $0x60] sm:$0xff]
  %v38 = vld [vmem:[%s1 + $0x68] sm:$0xff]
  %v39 = vld [vmem:[%s1 + $0x70] sm:$0xff]
  %v40 = vld [vmem:[%s1 + $0x78] sm:$0xff]
  %v41 = vld [vmem:[%s1 + $0x80] sm:$0xff]
  %v42 = vld [vmem:[%s1 + $0x88] sm:$0xff]
  %v43 = vld [vmem:[%s1 + $0x90] sm:$0xff]
  %v44 = vld [vmem:[%s1 + $0x98] sm:$0xff]
  %v45 = vld [vmem:[%s1 + $0xa0] sm:$0xff]
  %v46 = vld [vmem:[%s1 + $0xa8] sm:$0xff]
  %v47 = vld [vmem:[%s1 + $0xb0] sm:$0xff]
  %v48 = vld [vmem:[%s1 + $0xb8] sm:$0xff]
  %v49 = vld [vmem:[%s1 + $0xc0] sm:$0xff]
  %v50 = vld [vmem:[%s1 + $0xc8] sm:$0xff]
  %v51 = vld [vmem:[%s1 + $0xd0] sm:$0xff]
  %v52 = vld [vmem:[%s1 + $0xd8] sm:$0xff]
  %v53 = vld [vmem:[%s1 + $0xe0] sm:$0xff]
  %v54 = vld [vmem:[%s1 + $0xe8] sm:$0xff]
  %v55 = vld [vmem:[%s1 + $0xf0] sm:$0xff]
  %v56 = vld [vmem:[%s1 + $0xf8] sm:$0xff]
  %57 = vmatprep.subr.mxu0 0.0
  %58 = vmatpush1.msra.mxu0 %v40
  %59 = vmatprep.subr.mxu0 0.0
  %60 = vmatpush1.msra.mxu0 %v39
  %61 = vmatprep.subr.mxu0 0.0
  %62 = vmatpush1.msra.mxu0 %v38
  %63 = vmatprep.subr.mxu0 0.0
  %64 = vmatpush1.msra.mxu0 %v37
  %65 = vmatprep.subr.mxu0 0.0
  %66 = vmatpush1.msra.mxu0 %v36
  %67 = vmatprep.subr.mxu0 0.0
  %68 = vmatpush1.msra.mxu0 %v35
  %69 = vmatprep.subr.mxu0 0.0
  %70 = vmatpush1.msra.mxu0 %v34
  %71 = vmatprep.subr.mxu0 0.0
  %72 = vmatpush1.msra.mxu0 %v33
  %73 = vmatprep.subr.mxu0 0.0
  %74 = vmatpush1.msra.mxu0 %v32
  %75 = vmatprep.subr.mxu0 0.0
  %76 = vmatpush1.msra.mxu0 %v31
  %77 = vmatprep.subr.mxu0 0.0
  %78 = vmatpush1.msra.mxu0 %v30
  %79 = vmatprep.subr.mxu0 0.0
  %80 = vmatpush1.msra.mxu0 %v29
  %81 = vmatprep.subr.mxu0 0.0
  %82 = vmatpush1.msra.mxu0 %v28
  %83 = vmatprep.subr.mxu0 0.0
  %84 = vmatpush1.msra.mxu0 %v27
  %85 = vmatprep.subr.mxu0 0.0
  %86 = vmatpush1.msra.mxu0 %v26
  %87 = vmatprep.subr.mxu0 0.0
  %88 = vmatpush1.msra.mxu0 %v25
  %89 = vmatprep.subr.mxu0 0.0
  %90 = vmatpush2.msra.mxu0 %v56
  %91 = vmatprep.subr.mxu0 0.0
  %92 = vmatpush2.msra.mxu0 %v55
  %93 = vmatprep.subr.mxu0 0.0
  %94 = vmatpush2.msra.mxu0 %v54
  %95 = vmatprep.subr.mxu0 0.0
  %96 = vmatpush2.msra.mxu0 %v53
  %97 = vmatprep.subr.mxu0 0.0
  %98 = vmatpush2.msra.mxu0 %v52
  %99 = vmatprep.subr.mxu0 0.0
  %100 = vmatpush2.msra.mxu0 %v51
  %101 = vmatprep.subr.mxu0 0.0
  %102 = vmatpush2.msra.mxu0 %v50
  %103 = vmatprep.subr.mxu0 0.0
  %104 = vmatpush2.msra.mxu0 %v49
  %105 = vmatprep.subr.mxu0 0.0
  %106 = vmatpush2.msra.mxu0 %v48
  %107 = vmatprep.subr.mxu0 0.0
  %108 = vmatpush2.msra.mxu0 %v47
  %109 = vmatprep.subr.mxu0 0.0
  %110 = vmatpush2.msra.mxu0 %v46
  %111 = vmatprep.subr.mxu0 0.0
  %112 = vmatpush2.msra.mxu0 %v45
  %113 = vmatprep.subr.mxu0 0.0
  %114 = vmatpush2.msra.mxu0 %v44
  %115 = vmatprep.subr.mxu0 0.0
  %116 = vmatpush2.msra.mxu0 %v43
  %117 = vmatprep.subr.mxu0 0.0
  %118 = vmatpush2.msra.mxu0 %v42
  %119 = vmatprep.subr.mxu0 0.0
  %120 = vmatpush2.msra.mxu0 %v41
  %121 = vmatprep.mubr.f32.mxu0 %v21
  %122 = vmatmul.mubr.f32.gmra.mxu0 %v19
  %v123 = vpop.f32.mrf.mxu0
  %v124 = vadd.f32 0.0, %v123
  %v125 = vpop.f32.mrf.mxu0
  %126 = vdwg.mxu0
  %v127 = vrcp.pop %v24
  %v128 = vmul.f32 %v124, %v127
  %vm129 = vcmask 15360
  %130 = vst.msk [vmem:[%s2] sm:$0xff] %vm129, %v128
  // Predicated region
  $region10: #{tpu_custom_call.1} parent=0 // pred_check
    _
  $region11: #{tpu_custom_call.1} parent=0 // pred_check_branch
    %132 = sbr.rel (0) target = $region13
  $region12: #{tpu_custom_call.1} parent=0 // pred_region
    _
  $region13: #{tpu_custom_call.1} parent=0 // pred_fallthru
    _
  // Predicated region
  $region14: #{tpu_custom_call.1} parent=0 // pred_check
    _
  $region15: #{tpu_custom_call.1} parent=0 // pred_check_branch
    %134 = sbr.rel (0) target = $region17
  $region16: #{tpu_custom_call.1} parent=0 // pred_region
    _
  $region17: #{tpu_custom_call.1} parent=0 // pred_fallthru
    _

</llo_original>
